<compile_context>
chip_gen: v6e
topology: v6e:2x2x1
jax: 0.10.0
libtpu: 0.0.40
codegen_flags: <defaults>
</compile_context>

<pallas_src>
import functools

import jax
import jax.numpy as jnp
from jax.experimental import pallas as pl
from jax.experimental.pallas import tpu as pltpu


_LANE = 128
_VMEM_TILE_BUDGET = 8 * 1024 * 1024   # bytes budget for double-buffered blocks
_VMEM_LIMIT = 32 * 1024 * 1024        # explicit scoped-VMEM limit (safe v5e/v6e/v7x)


def _cdiv(a, b):
    return (a + b - 1) // b


def _round_up(a, b):
    return _cdiv(a, b) * b


# -----------------------------------------------------------------------------
# Kernel 1: strided temporal conv (single MXU matmul over all k taps) + lane
#           partial sums / sums-of-squares for BatchNorm batch statistics.
# -----------------------------------------------------------------------------
def _conv_stats_kernel(*refs, k, scale, pad, t_in):
    x_refs = refs[:k]                       # each (C_in, TILE_M)
    w_ref = refs[k]                         # (C_out, k*C_in)
    y_ref, sum_ref, sq_ref = refs[k + 1:k + 4]

    to = pl.program_id(1)                   # output time index
    t_base = to * scale - pad

    parts = []
    for dk in range(k):
        xk = x_refs[dk][...]                # (C_in, TILE_M)
        if dk != pad:                       # middle tap is always in range
            t = t_base + dk
            valid = jnp.logical_and(t >= 0, t < t_in)
            xk = xk * valid.astype(xk.dtype)
        parts.append(xk)
    xcat = jnp.concatenate(parts, axis=0) if k > 1 else parts[0]   # (k*C_in, TILE_M)

    acc = jnp.dot(w_ref[...], xcat, preferred_element_type=jnp.float32)  # (C_out, TILE_M)

    y_ref[...] = acc.astype(y_ref.dtype)
    # Per-grid-step partial statistics (no cross-step accumulator -> grid stays
    # fully "parallel"); stores are tiny compared to the main y block.
    sum_ref[...] = jnp.sum(acc, axis=1, keepdims=True)          # (C_out, 1)
    sq_ref[...] = jnp.sum(acc * acc, axis=1, keepdims=True)     # (C_out, 1)


# -----------------------------------------------------------------------------
# Kernel 2: fused BatchNorm (precomputed per-channel scale/shift) + ReLU,
#           written in place over the conv output (input_output_aliases).
# -----------------------------------------------------------------------------
def _bn_relu_kernel(y_ref, scale_ref, shift_ref, o_ref):
    o_ref[...] = jnp.maximum(
        y_ref[...] * scale_ref[...] + shift_ref[...], 0.0).astype(o_ref.dtype)


def temporal_downsampling(x, w, gamma, beta, *, kernel_size=3, scale=2,
                          eps=1e-3):
    """Forward of Temporal_Downsampling.

    x:     (N, C_in, T, H, W) float32
    w:     (C_out, C_in, k, 1, 1) float32 (Conv3d weight, bias=False)
    gamma: (C_out,) BN weight    beta: (C_out,) BN bias
    returns (N, C_out, T_out, H, W) float32
    """
    N, C_in, T, H, W = x.shape
    C_out = w.shape[0]
    k = kernel_size
    pad = k // 2
    T_out = (T + 2 * pad - k) // scale + 1
    M = H * W

    # ---- lane-dim tiling: multiple of 128, bounded by a VMEM budget ---------
    bytes_per_lane = 4 * (2 * k * C_in + 2 * C_out)     # double-buffered in+out
    max_tile = max(_LANE, min(
        8192, _VMEM_TILE_BUDGET // bytes_per_lane // _LANE * _LANE))
    n_m = _cdiv(M, max_tile)
    tile_m = _round_up(_cdiv(M, n_m), _LANE)
    Mp = n_m * tile_m

    # ---- zero-copy views (lane padding only if H*W is not 128-aligned) ------
    xr = x.reshape(N, C_in, T, M)
    if Mp != M:
        xr = jnp.pad(xr, ((0, 0), (0, 0), (0, 0), (0, Mp - M)))
    x_flat = xr.reshape(N, C_in, T * Mp)
    # (C_out, C_in, k) -> (C_out, k*C_in), tap-major, for a single MXU matmul.
    w2 = jnp.transpose(w[:, :, :, 0, 0], (0, 2, 1)).reshape(C_out, k * C_in)

    # ---- Pallas pass 1: temporal conv + per-step partial batch statistics ---
    def x_idx(dk):
        def idx(n, to, m):
            t = jnp.clip(to * scale + dk - pad, 0, T - 1)  # clamped; masked in-kernel
            return (n, 0, t * n_m + m)
        return idx

    x_specs = [pl.BlockSpec((None, C_in, tile_m), x_idx(dk)) for dk in range(k)]
    w_spec = pl.BlockSpec((C_out, k * C_in), lambda n, to, m: (0, 0))
    y_spec = pl.BlockSpec((None, C_out, tile_m),
                          lambda n, to, m: (n, 0, to * n_m + m))
    stat_spec = pl.BlockSpec((None, None, None, C_out, 1),
                             lambda n, to, m: (n, to, m, 0, 0))

    y_flat, psum, psq = pl.pallas_call(
        functools.partial(_conv_stats_kernel, k=k, scale=scale, pad=pad, t_in=T),
        out_shape=(
            jax.ShapeDtypeStruct((N, C_out, T_out * Mp), jnp.float32),
            jax.ShapeDtypeStruct((N, T_out, n_m, C_out, 1), jnp.float32),
            jax.ShapeDtypeStruct((N, T_out, n_m, C_out, 1), jnp.float32),
        ),
        grid_spec=pltpu.PrefetchScalarGridSpec(
            num_scalar_prefetch=0,
            grid=(N, T_out, n_m),
            in_specs=[*x_specs, w_spec],
            out_specs=(y_spec, stat_spec, stat_spec),
        ),
        compiler_params=pltpu.CompilerParams(
            dimension_semantics=("parallel", "parallel", "parallel"),
            vmem_limit_bytes=_VMEM_LIMIT),
    )(*([x_flat] * k), w2)

    # ---- glue: batch statistics -> per-channel scale/shift (training BN) ----
    count = float(N * T_out * M)            # true count (zero-padded lanes add 0)
    tot = jnp.sum(psum, axis=(0, 1, 2, 4))                  # (C_out,)
    tot_sq = jnp.sum(psq, axis=(0, 1, 2, 4))                # (C_out,)
    mean = tot / count
    var = jnp.maximum(tot_sq / count - mean * mean, 0.0)    # guard cancellation
    inv = gamma / jnp.sqrt(var + eps)
    shift = beta - mean * inv

    # ---- Pallas pass 2: fused BatchNorm + ReLU (aliases the conv buffer) ----
    out_flat = pl.pallas_call(
        _bn_relu_kernel,
        out_shape=jax.ShapeDtypeStruct((N, C_out, T_out * Mp), jnp.float32),
        grid_spec=pltpu.PrefetchScalarGridSpec(
            num_scalar_prefetch=0,
            grid=(N, T_out * n_m),
            in_specs=[
                pl.BlockSpec((None, C_out, tile_m), lambda n, j: (n, 0, j)),
                pl.BlockSpec((C_out, 1), lambda n, j: (0, 0)),
                pl.BlockSpec((C_out, 1), lambda n, j: (0, 0)),
            ],
            out_specs=pl.BlockSpec((None, C_out, tile_m), lambda n, j: (n, 0, j)),
        ),
        compiler_params=pltpu.CompilerParams(
            dimension_semantics=("parallel", "parallel"),
            vmem_limit_bytes=_VMEM_LIMIT),
        input_output_aliases={0: 0},
    )(y_flat, inv.reshape(C_out, 1), shift.reshape(C_out, 1))

    # ---- zero-copy (slice only if lane-padded) back to NCDHW ----------------
    out = out_flat.reshape(N, C_out, T_out, Mp)
    if Mp != M:
        out = out[:, :, :, :M]
    return out.reshape(N, C_out, T_out, H, W)


# -----------------------------------------------------------------------------
# Pure-JAX reference for correctness checking.
# -----------------------------------------------------------------------------
def _reference(x, w, gamma, beta, k, scale, eps):
    N, C_in, T, H, W = x.shape
    C_out = w.shape[0]
    pad = k // 2
    T_out = (T + 2 * pad - k) // scale + 1
    xp = jnp.pad(x, ((0, 0), (0, 0), (pad, pad), (0, 0), (0, 0)))
    ys = []
    for to in range(T_out):
        acc = jnp.zeros((N, C_out, H, W), jnp.float32)
        for dk in range(k):
            acc += jnp.einsum('oc,nchw->nohw', w[:, :, dk, 0, 0],
                              xp[:, :, to * scale + dk])
        ys.append(acc)
    y = jnp.stack(ys, axis=2)                               # (N, C_out, T_out, H, W)
    mean = y.mean(axis=(0, 2, 3, 4), keepdims=True)
    var = ((y - mean) ** 2).mean(axis=(0, 2, 3, 4), keepdims=True)
    g = gamma.reshape(1, C_out, 1, 1, 1)
    b = beta.reshape(1, C_out, 1, 1, 1)
    return jnp.maximum((y - mean) / jnp.sqrt(var + eps) * g + b, 0.0)


if __name__ == "__main__":
    # Small, deterministic example consistent with the module:
    # Conv3d(in=8, out=8, kernel=(3,1,1), stride=(2,1,1), pad=(1,0,0), bias=False)
    # T=9 (odd) exercises both temporal boundary masks.
    N, C_in, C_out, T, H, W = 2, 8, 8, 9, 8, 8
    K, SCALE, EPS = 3, 2, 1e-3

    key = jax.random.PRNGKey(0)
    kx, kw, kg, kb = jax.random.split(key, 4)
    x = jax.random.normal(kx, (N, C_in, T, H, W), dtype=jnp.float32)
    w = jax.random.normal(kw, (C_out, C_in, K, 1, 1), dtype=jnp.float32) * 0.1
    gamma = 1.0 + 0.05 * jax.random.normal(kg, (C_out,), dtype=jnp.float32)
    beta = 0.05 * jax.random.normal(kb, (C_out,), dtype=jnp.float32)

    fwd = jax.jit(functools.partial(temporal_downsampling, kernel_size=K,
                                    scale=SCALE, eps=EPS))
    out = jax.block_until_ready(fwd(x, w, gamma, beta))

    ref = _reference(x, w, gamma, beta, K, SCALE, EPS)
    assert out.shape == ref.shape, (out.shape, ref.shape)
    assert jnp.allclose(out, ref, atol=1e-4, rtol=1e-4), \
        float(jnp.max(jnp.abs(out - ref)))

    print("KERNEL_OK")
</pallas_src>

<mosaic_0001>
module attributes {stable_mosaic.version = 11 : i64} {
  func.func @_bn_relu_kernel(%arg0: i32, %arg1: i32, %arg2: memref<1x8x128xf32, #tpu.memory_space<vmem>>, %arg3: memref<8x1xf32, #tpu.memory_space<vmem>>, %arg4: memref<8x1xf32, #tpu.memory_space<vmem>>, %arg5: memref<1x8x128xf32, #tpu.memory_space<vmem>>) attributes {dimension_semantics = [#tpu.dimension_semantics<parallel>, #tpu.dimension_semantics<parallel>], iteration_bounds = array<i64: 2, 5>, scalar_prefetch = 0 : i64, scratch_operands = 0 : i64, tpu.core_type = #tpu.core_type<tc>, window_params = [{transform_indices = @transform_0, window_bounds = array<i64: 1, 8, 128>}, {pipeline_mode = #tpu.pipeline_mode<synchronous>, transform_indices = @transform_1, window_bounds = array<i64: 8, 1>}, {pipeline_mode = #tpu.pipeline_mode<synchronous>, transform_indices = @transform_2, window_bounds = array<i64: 8, 1>}, {transform_indices = @transform_3, window_bounds = array<i64: 1, 8, 128>}]} {
    %c0 = arith.constant 0 : index
    %c0_0 = arith.constant 0 : index
    %c0_1 = arith.constant 0 : index
    %0 = vector.load %arg2[%c0, %c0_0, %c0_1] : memref<1x8x128xf32, #tpu.memory_space<vmem>>, vector<1x8x128xf32>
    %1 = vector.shape_cast %0 : vector<1x8x128xf32> to vector<8x128xf32>
    %c0_2 = arith.constant 0 : index
    %c0_3 = arith.constant 0 : index
    %2 = vector.load %arg3[%c0_2, %c0_3] : memref<8x1xf32, #tpu.memory_space<vmem>>, vector<8x1xf32>
    %3 = vector.broadcast %2 : vector<8x1xf32> to vector<8x128xf32>
    %4 = arith.mulf %1, %3 : vector<8x128xf32>
    %c0_4 = arith.constant 0 : index
    %c0_5 = arith.constant 0 : index
    %5 = vector.load %arg4[%c0_4, %c0_5] : memref<8x1xf32, #tpu.memory_space<vmem>>, vector<8x1xf32>
    %6 = vector.broadcast %5 : vector<8x1xf32> to vector<8x128xf32>
    %7 = arith.addf %4, %6 : vector<8x128xf32>
    %cst = arith.constant 0.000000e+00 : f32
    %8 = vector.broadcast %cst : f32 to vector<8x128xf32>
    %9 = arith.maximumf %7, %8 : vector<8x128xf32>
    %c0_6 = arith.constant 0 : index
    %c0_7 = arith.constant 0 : index
    %c0_8 = arith.constant 0 : index
    %10 = vector.load %arg5[%c0_6, %c0_7, %c0_8] : memref<1x8x128xf32, #tpu.memory_space<vmem>>, vector<1x8x128xf32>
    %11 = vector.shape_cast %10 : vector<1x8x128xf32> to vector<8x128xf32>
    %12 = vector.shape_cast %9 : vector<8x128xf32> to vector<1x8x128xf32>
    tpu.vector_store %arg5[%c0_6, %c0_7, %c0_8], %12 {strides = array<i32>} : memref<1x8x128xf32, #tpu.memory_space<vmem>>, vector<1x8x128xf32>,
    return
  }
  func.func @transform_0(%arg0: i32, %arg1: i32) -> (i32, i32, i32) {
    %c0_i32 = arith.constant 0 : i32
    %c0_i32_0 = arith.constant 0 : i32
    return %arg0, %c0_i32, %arg1 : i32, i32, i32
  }
  func.func @transform_1(%arg0: i32, %arg1: i32) -> (i32, i32) {
    %c0_i32 = arith.constant 0 : i32
    %c0_i32_0 = arith.constant 0 : i32
    %c0_i32_1 = arith.constant 0 : i32
    return %c0_i32, %c0_i32_0 : i32, i32
  }
  func.func @transform_2(%arg0: i32, %arg1: i32) -> (i32, i32) {
    %c0_i32 = arith.constant 0 : i32
    %c0_i32_0 = arith.constant 0 : i32
    %c0_i32_1 = arith.constant 0 : i32
    return %c0_i32, %c0_i32_0 : i32, i32
  }
  func.func @transform_3(%arg0: i32, %arg1: i32) -> (i32, i32, i32) {
    %c0_i32 = arith.constant 0 : i32
    %c0_i32_0 = arith.constant 0 : i32
    return %arg0, %c0_i32, %arg1 : i32, i32, i32
  }
}

module attributes {stable_mosaic.version = 11 : i64} {
  func.func @_conv_stats_kernel(%arg0: i32, %arg1: i32, %arg2: i32, %arg3: memref<1x8x128xf32, #tpu.memory_space<vmem>>, %arg4: memref<1x8x128xf32, #tpu.memory_space<vmem>>, %arg5: memref<1x8x128xf32, #tpu.memory_space<vmem>>, %arg6: memref<8x24xf32, #tpu.memory_space<vmem>>, %arg7: memref<1x8x128xf32, #tpu.memory_space<vmem>>, %arg8: memref<1x1x1x8x1xf32, #tpu.memory_space<vmem>>, %arg9: memref<1x1x1x8x1xf32, #tpu.memory_space<vmem>>) attributes {dimension_semantics = [#tpu.dimension_semantics<parallel>, #tpu.dimension_semantics<parallel>, #tpu.dimension_semantics<parallel>], iteration_bounds = array<i64: 2, 5, 1>, scalar_prefetch = 0 : i64, scratch_operands = 0 : i64, tpu.core_type = #tpu.core_type<tc>, window_params = [{transform_indices = @transform_0, window_bounds = array<i64: 1, 8, 128>}, {transform_indices = @transform_1, window_bounds = array<i64: 1, 8, 128>}, {transform_indices = @transform_2, window_bounds = array<i64: 1, 8, 128>}, {pipeline_mode = #tpu.pipeline_mode<synchronous>, transform_indices = @transform_3, window_bounds = array<i64: 8, 24>}, {transform_indices = @transform_4, window_bounds = array<i64: 1, 8, 128>}, {transform_indices = @transform_5, window_bounds = array<i64: 1, 1, 1, 8, 1>}, {transform_indices = @transform_6, window_bounds = array<i64: 1, 1, 1, 8, 1>}]} {
    %c2_i32 = arith.constant 2 : i32
    %0 = arith.muli %arg1, %c2_i32 : i32
    %c1_i32 = arith.constant 1 : i32
    %1 = arith.subi %0, %c1_i32 : i32
    %c0 = arith.constant 0 : index
    %c0_0 = arith.constant 0 : index
    %c0_1 = arith.constant 0 : index
    %2 = vector.load %arg3[%c0, %c0_0, %c0_1] : memref<1x8x128xf32, #tpu.memory_space<vmem>>, vector<1x8x128xf32>
    %3 = vector.shape_cast %2 : vector<1x8x128xf32> to vector<8x128xf32>
    %c0_i32 = arith.constant 0 : i32
    %4 = arith.addi %1, %c0_i32 : i32
    %c0_i32_2 = arith.constant 0 : i32
    %5 = arith.cmpi sge, %4, %c0_i32_2 : i32
    %c9_i32 = arith.constant 9 : i32
    %6 = arith.cmpi slt, %4, %c9_i32 : i32
    %7 = arith.andi %5, %6 : i1
    %8 = arith.extui %7 : i1 to i32
    %9 = arith.sitofp %8 : i32 to f32
    %10 = vector.broadcast %9 : f32 to vector<8x128xf32>
    %11 = arith.mulf %3, %10 : vector<8x128xf32>
    %c0_3 = arith.constant 0 : index
    %c0_4 = arith.constant 0 : index
    %c0_5 = arith.constant 0 : index
    %12 = vector.load %arg4[%c0_3, %c0_4, %c0_5] : memref<1x8x128xf32, #tpu.memory_space<vmem>>, vector<1x8x128xf32>
    %13 = vector.shape_cast %12 : vector<1x8x128xf32> to vector<8x128xf32>
    %c0_6 = arith.constant 0 : index
    %c0_7 = arith.constant 0 : index
    %c0_8 = arith.constant 0 : index
    %14 = vector.load %arg5[%c0_6, %c0_7, %c0_8] : memref<1x8x128xf32, #tpu.memory_space<vmem>>, vector<1x8x128xf32>
    %15 = vector.shape_cast %14 : vector<1x8x128xf32> to vector<8x128xf32>
    %c2_i32_9 = arith.constant 2 : i32
    %16 = arith.addi %1, %c2_i32_9 : i32
    %c0_i32_10 = arith.constant 0 : i32
    %17 = arith.cmpi sge, %16, %c0_i32_10 : i32
    %c9_i32_11 = arith.constant 9 : i32
    %18 = arith.cmpi slt, %16, %c9_i32_11 : i32
    %19 = arith.andi %17, %18 : i1
    %20 = arith.extui %19 : i1 to i32
    %21 = arith.sitofp %20 : i32 to f32
    %22 = vector.broadcast %21 : f32 to vector<8x128xf32>
    %23 = arith.mulf %15, %22 : vector<8x128xf32>
    %24 = tpu.concatenate %11, %13, %23 in 0 : vector<8x128xf32>, vector<8x128xf32>, vector<8x128xf32> -> vector<24x128xf32>
    %c0_12 = arith.constant 0 : index
    %c0_13 = arith.constant 0 : index
    %25 = vector.load %arg6[%c0_12, %c0_13] : memref<8x24xf32, #tpu.memory_space<vmem>>, vector<8x24xf32>
    %cst = arith.constant dense<0.000000e+00> : vector<8x128xf32>
    %26 = tpu.matmul %25, %24, %cst {dimension_numbers = #tpu.dot_dimension_numbers<[1], [0], [0], [1], [0, 0, 1, 1], [], []>} : vector<8x24xf32>, vector<24x128xf32>, vector<8x128xf32> -> vector<8x128xf32>
    %c0_14 = arith.constant 0 : index
    %c0_15 = arith.constant 0 : index
    %c0_16 = arith.constant 0 : index
    %27 = vector.load %arg7[%c0_14, %c0_15, %c0_16] : memref<1x8x128xf32, #tpu.memory_space<vmem>>, vector<1x8x128xf32>
    %28 = vector.shape_cast %27 : vector<1x8x128xf32> to vector<8x128xf32>
    %29 = vector.shape_cast %26 : vector<8x128xf32> to vector<1x8x128xf32>
    tpu.vector_store %arg7[%c0_14, %c0_15, %c0_16], %29 {strides = array<i32>} : memref<1x8x128xf32, #tpu.memory_space<vmem>>, vector<1x8x128xf32>,
    %cst_17 = arith.constant dense<0.000000e+00> : vector<8xf32>
    %30 = vector.multi_reduction <add>, %26, %cst_17 [1] : vector<8x128xf32> to vector<8xf32>
    %31 = vector.shape_cast %30 : vector<8xf32> to vector<8x1xf32>
    %c0_18 = arith.constant 0 : index
    %c0_19 = arith.constant 0 : index
    %c0_20 = arith.constant 0 : index
    %c0_21 = arith.constant 0 : index
    %c0_22 = arith.constant 0 : index
    %32 = vector.load %arg8[%c0_18, %c0_19, %c0_20, %c0_21, %c0_22] : memref<1x1x1x8x1xf32, #tpu.memory_space<vmem>>, vector<1x1x1x8x1xf32>
    %33 = vector.shape_cast %32 : vector<1x1x1x8x1xf32> to vector<8x1xf32>
    %34 = vector.shape_cast %31 : vector<8x1xf32> to vector<1x1x1x8x1xf32>
    tpu.vector_store %arg8[%c0_18, %c0_19, %c0_20, %c0_21, %c0_22], %34 {strides = array<i32>} : memref<1x1x1x8x1xf32, #tpu.memory_space<vmem>>, vector<1x1x1x8x1xf32>,
    %35 = arith.mulf %26, %26 : vector<8x128xf32>
    %cst_23 = arith.constant dense<0.000000e+00> : vector<8xf32>
    %36 = vector.multi_reduction <add>, %35, %cst_23 [1] : vector<8x128xf32> to vector<8xf32>
    %37 = vector.shape_cast %36 : vector<8xf32> to vector<8x1xf32>
    %c0_24 = arith.constant 0 : index
    %c0_25 = arith.constant 0 : index
    %c0_26 = arith.constant 0 : index
    %c0_27 = arith.constant 0 : index
    %c0_28 = arith.constant 0 : index
    %38 = vector.load %arg9[%c0_24, %c0_25, %c0_26, %c0_27, %c0_28] : memref<1x1x1x8x1xf32, #tpu.memory_space<vmem>>, vector<1x1x1x8x1xf32>
    %39 = vector.shape_cast %38 : vector<1x1x1x8x1xf32> to vector<8x1xf32>
    %40 = vector.shape_cast %37 : vector<8x1xf32> to vector<1x1x1x8x1xf32>
    tpu.vector_store %arg9[%c0_24, %c0_25, %c0_26, %c0_27, %c0_28], %40 {strides = array<i32>} : memref<1x1x1x8x1xf32, #tpu.memory_space<vmem>>, vector<1x1x1x8x1xf32>,
    return
  }
  func.func @transform_0(%arg0: i32, %arg1: i32, %arg2: i32) -> (i32, i32, i32) {
    %c2_i32 = arith.constant 2 : i32
    %0 = arith.muli %arg1, %c2_i32 : i32
    %c0_i32 = arith.constant 0 : i32
    %1 = arith.addi %0, %c0_i32 : i32
    %c1_i32 = arith.constant 1 : i32
    %2 = arith.subi %1, %c1_i32 : i32
    %c0_i32_0 = arith.constant 0 : i32
    %c8_i32 = arith.constant 8 : i32
    %3 = arith.maxsi %c0_i32_0, %2 : i32
    %4 = arith.minsi %c8_i32, %3 : i32
    %c1_i32_1 = arith.constant 1 : i32
    %5 = arith.muli %4, %c1_i32_1 : i32
    %6 = arith.addi %5, %arg2 : i32
    %c0_i32_2 = arith.constant 0 : i32
    %c0_i32_3 = arith.constant 0 : i32
    return %arg0, %c0_i32_2, %6 : i32, i32, i32
  }
  func.func @transform_1(%arg0: i32, %arg1: i32, %arg2: i32) -> (i32, i32, i32) {
    %c2_i32 = arith.constant 2 : i32
    %0 = arith.muli %arg1, %c2_i32 : i32
    %c1_i32 = arith.constant 1 : i32
    %1 = arith.addi %0, %c1_i32 : i32
    %c1_i32_0 = arith.constant 1 : i32
    %2 = arith.subi %1, %c1_i32_0 : i32
    %c0_i32 = arith.constant 0 : i32
    %c8_i32 = arith.constant 8 : i32
    %3 = arith.maxsi %c0_i32, %2 : i32
    %4 = arith.minsi %c8_i32, %3 : i32
    %c1_i32_1 = arith.constant 1 : i32
    %5 = arith.muli %4, %c1_i32_1 : i32
    %6 = arith.addi %5, %arg2 : i32
    %c0_i32_2 = arith.constant 0 : i32
    %c0_i32_3 = arith.constant 0 : i32
    return %arg0, %c0_i32_2, %6 : i32, i32, i32
  }
  func.func @transform_2(%arg0: i32, %arg1: i32, %arg2: i32) -> (i32, i32, i32) {
    %c2_i32 = arith.constant 2 : i32
    %0 = arith.muli %arg1, %c2_i32 : i32
    %c2_i32_0 = arith.constant 2 : i32
    %1 = arith.addi %0, %c2_i32_0 : i32
    %c1_i32 = arith.constant 1 : i32
    %2 = arith.subi %1, %c1_i32 : i32
    %c0_i32 = arith.constant 0 : i32
    %c8_i32 = arith.constant 8 : i32
    %3 = arith.maxsi %c0_i32, %2 : i32
    %4 = arith.minsi %c8_i32, %3 : i32
    %c1_i32_1 = arith.constant 1 : i32
    %5 = arith.muli %4, %c1_i32_1 : i32
    %6 = arith.addi %5, %arg2 : i32
    %c0_i32_2 = arith.constant 0 : i32
    %c0_i32_3 = arith.constant 0 : i32
    return %arg0, %c0_i32_2, %6 : i32, i32, i32
  }
  func.func @transform_3(%arg0: i32, %arg1: i32, %arg2: i32) -> (i32, i32) {
    %c0_i32 = arith.constant 0 : i32
    %c0_i32_0 = arith.constant 0 : i32
    %c0_i32_1 = arith.constant 0 : i32
    return %c0_i32, %c0_i32_0 : i32, i32
  }
  func.func @transform_4(%arg0: i32, %arg1: i32, %arg2: i32) -> (i32, i32, i32) {
    %c1_i32 = arith.constant 1 : i32
    %0 = arith.muli %arg1, %c1_i32 : i32
    %1 = arith.addi %0, %arg2 : i32
    %c0_i32 = arith.constant 0 : i32
    %c0_i32_0 = arith.constant 0 : i32
    return %arg0, %c0_i32, %1 : i32, i32, i32
  }
  func.func @transform_5(%arg0: i32, %arg1: i32, %arg2: i32) -> (i32, i32, i32, i32, i32) {
    %c0_i32 = arith.constant 0 : i32
    %c0_i32_0 = arith.constant 0 : i32
    %c0_i32_1 = arith.constant 0 : i32
    return %arg0, %arg1, %arg2, %c0_i32, %c0_i32_0 : i32, i32, i32, i32, i32
  }
  func.func @transform_6(%arg0: i32, %arg1: i32, %arg2: i32) -> (i32, i32, i32, i32, i32) {
    %c0_i32 = arith.constant 0 : i32
    %c0_i32_0 = arith.constant 0 : i32
    %c0_i32_1 = arith.constant 0 : i32
    return %arg0, %arg1, %arg2, %c0_i32, %c0_i32_0 : i32, i32, i32, i32, i32
  }
}

</mosaic_0001>

<llo_original>
// kernel: temporal_downsampling.3
$region0: #{temporal_downsampling.3}
  #allocation0 [shape = 'u32[]', space=smem, size = 0x4, offset = 0x4, fixed_abs, tag = 'smem constant byte address 0x4 - core index']
  #allocation1 [shape = 'u32[144,128]{1,0:T(1,128)}', space=vmem, size = 0x12000, scoped, tag = 'internal scratch']
  %s0 = inlined_call_operand.vmem [shape: f32[2,8,640], index: 0, kind: input, shape index: {}, may-alias: {0,3}]
  %s1 = inlined_call_operand.vmem [shape: f32[8,1], index: 1, kind: input, shape index: {}]
  %s2 = inlined_call_operand.vmem [shape: f32[8,1], index: 2, kind: input, shape index: {}]
  %s3 = inlined_call_operand.vmem [shape: f32[2,8,640], index: 3, kind: output, shape index: {}, may-alias: {0,3}]
  %s4 = sld [smem:[#allocation0]]
  $region45: #{temporal_downsampling.3} parent=0
    _
  %s6 = ssub.s32 1, %s4
  %s7 = scalar_select 0, %s6, %s4
  loop: start=0, step=1, limit=12
  $region2: #{temporal_downsampling.3} parent=0 // loop_pre_header
    _
  $region3: #{temporal_downsampling.3} parent=0 // loop_header
    %s9 = sphi 0, %s13
    %p10 = scmp.ge.s32.totalorder %s9, 12
    %s16 = sphi 0, %s28
    %s17 = sphi 0, %s24
    %s18 = sphi 0, %s16
    %s19 = sphi 0, %s17
    %s20 = sphi 0, %s18
    %s21 = sphi 0, %s19
    %s33 = sphi 0, %s35
    %s36 = sphi 0, %s33
    %s37 = sphi 0, %s36
    %s53 = sphi 0, %s37
    %s57 = sphi 0, %s57
    %s59 = sphi 0, %s57
    %s60 = sphi 0, %s59
    %s74 = sphi 0, %s60
    %s78 = sphi 0, %s78
    %s80 = sphi 0, %s78
    %s81 = sphi 0, %s80
    %s95 = sphi 0, %s81
    %s103 = sphi 0, %s105
    %s106 = sphi 0, %s103
    %s107 = sphi 0, %s106
    %s123 = sphi 0, %s107
  $region4: #{temporal_downsampling.3} parent=0 // loop_header_branch
    %12 = sbr.rel (%p10) target = $region8
  $region5: #{temporal_downsampling.3} parent=0 // loop_body
    %s14 = ssub.s32 %s9, 1
    %s15 = ssub.s32 %s9, 2
    %s22 = sadd.s32 1, %s17
    %p23 = scmp.ge.s32.totalorder %s22, 5
    %s24 = scalar_select %p23, 0, %s22
    %s25 = sadd.s32 1, %s16
    %s26 = scalar_select %p23, %s25, %s16
    %p27 = scmp.ge.s32.totalorder %s26, 2
    %s28 = scalar_select %p27, 0, %s26
    %s29 = ssub.s32 %s16, %s28
    %s30 = ssub.s32 %s17, %s24
    %s31 = sor.u32 %s29, %s30
    %p32 = scmp.eq.s32.totalorder %s31, 0
    %s34 = sadd.s32 %s33, 1
    %s35 = scalar_select %p32, %s33, %s34
    %p38 = pneg %p32
    %p39 = scmp.eq.s32.totalorder %s9, 9
    %p40 = por %p38, %p39
    %p41 = scmp.ne.s32.totalorder %s33, %s36
    %p42 = scmp.eq.s32.totalorder %s9, 0
    %p43 = por %p41, %p42
    %p44 = scmp.ne.s32.totalorder %s33, %s36
    %p45 = scmp.eq.s32.totalorder %s14, 9
    %p46 = por %p44, %p45
    %p47 = scmp.ne.s32.totalorder %s36, %s37
    %p48 = scmp.eq.s32.totalorder %s14, 0
    %p49 = por %p47, %p48
    %p50 = scmp.ne.s32.totalorder %s36, %s37
    %p51 = scmp.eq.s32.totalorder %s15, 9
    %p52 = por %p50, %p51
    %p54 = scmp.ne.s32.totalorder %s37, %s53
    %p55 = scmp.eq.s32.totalorder %s15, 0
    %p56 = por %p54, %p55
    %s58 = sadd.s32 %s57, 1
    %p61 = scmp.eq.s32.totalorder %s9, 9
    %p62 = scmp.ne.s32.totalorder %s57, %s59
    %p63 = scmp.eq.s32.totalorder %s9, 0
    %p64 = por %p62, %p63
    %p65 = scmp.ne.s32.totalorder %s57, %s59
    %p66 = scmp.eq.s32.totalorder %s14, 9
    %p67 = por %p65, %p66
    %p68 = scmp.ne.s32.totalorder %s59, %s60
    %p69 = scmp.eq.s32.totalorder %s14, 0
    %p70 = por %p68, %p69
    %p71 = scmp.ne.s32.totalorder %s59, %s60
    %p72 = scmp.eq.s32.totalorder %s15, 9
    %p73 = por %p71, %p72
    %p75 = scmp.ne.s32.totalorder %s60, %s74
    %p76 = scmp.eq.s32.totalorder %s15, 0
    %p77 = por %p75, %p76
    %s79 = sadd.s32 %s78, 1
    %p82 = scmp.eq.s32.totalorder %s9, 9
    %p83 = scmp.ne.s32.totalorder %s78, %s80
    %p84 = scmp.eq.s32.totalorder %s9, 0
    %p85 = por %p83, %p84
    %p86 = scmp.ne.s32.totalorder %s78, %s80
    %p87 = scmp.eq.s32.totalorder %s14, 9
    %p88 = por %p86, %p87
    %p89 = scmp.ne.s32.totalorder %s80, %s81
    %p90 = scmp.eq.s32.totalorder %s14, 0
    %p91 = por %p89, %p90
    %p92 = scmp.ne.s32.totalorder %s80, %s81
    %p93 = scmp.eq.s32.totalorder %s15, 9
    %p94 = por %p92, %p93
    %p96 = scmp.ne.s32.totalorder %s81, %s95
    %p97 = scmp.eq.s32.totalorder %s15, 0
    %p98 = por %p96, %p97
    %s99 = ssub.s32 %s16, %s28
    %s100 = ssub.s32 %s17, %s24
    %s101 = sor.u32 %s99, %s100
    %p102 = scmp.eq.s32.totalorder %s101, 0
    %s104 = sadd.s32 %s103, 1
    %s105 = scalar_select %p102, %s103, %s104
    %p108 = pneg %p102
    %p109 = scmp.eq.s32.totalorder %s9, 9
    %p110 = por %p108, %p109
    %p111 = scmp.ne.s32.totalorder %s103, %s106
    %p112 = scmp.eq.s32.totalorder %s9, 0
    %p113 = por %p111, %p112
    %p114 = scmp.ne.s32.totalorder %s103, %s106
    %p115 = scmp.eq.s32.totalorder %s14, 9
    %p116 = por %p114, %p115
    %p117 = scmp.ne.s32.totalorder %s106, %s107
    %p118 = scmp.eq.s32.totalorder %s14, 0
    %p119 = por %p117, %p118
    %p120 = scmp.ne.s32.totalorder %s106, %s107
    %p121 = scmp.eq.s32.totalorder %s15, 9
    %p122 = por %p120, %p121
    %p124 = scmp.ne.s32.totalorder %s107, %s123
    %p125 = scmp.eq.s32.totalorder %s15, 0
    %p126 = por %p124, %p125
    %p127 = scmp.le.s32.totalorder 1, %s9
    %p128 = scmp.lt.s32.totalorder %s9, 11
    %p129 = pnand %p127, %p128
    %p130 = pneg %p129
    // Predicated region
    $region9: #{temporal_downsampling.3} parent=5 // pred_check
      _
    $region10: #{temporal_downsampling.3} parent=5 // pred_check_branch
      %132 = sbr.rel (%p129) target = $region12
    $region11: #{temporal_downsampling.3} parent=5 // pred_region
      %s133 = ssub.s32 %s9, 1
      // Predicated region
      $region13: #{temporal_downsampling.3} parent=11 // pred_check
        %p134 = pneg %p70
      $region14: #{temporal_downsampling.3} parent=11 // pred_check_branch
        %136 = sbr.rel (%p134) target = $region16
      $region15: #{temporal_downsampling.3} parent=11 // pred_region
        _
      $region16: #{temporal_downsampling.3} parent=11 // pred_fallthru
        _
      // Predicated region
      $region17: #{temporal_downsampling.3} parent=11 // pred_check
        %p137 = pneg %p91
      $region18: #{temporal_downsampling.3} parent=11 // pred_check_branch
        %139 = sbr.rel (%p137) target = $region20
      $region19: #{temporal_downsampling.3} parent=11 // pred_region
        _
      $region20: #{temporal_downsampling.3} parent=11 // pred_fallthru
        _
    $region12: #{temporal_downsampling.3} parent=5 // pred_fallthru
      _
    %p140 = scmp.lt.s32.totalorder %s9, 10
    // Predicated region
    $region21: #{temporal_downsampling.3} parent=5 // pred_check
      %p141 = pneg %p140
    $region22: #{temporal_downsampling.3} parent=5 // pred_check_branch
      %143 = sbr.rel (%p141) target = $region24
    $region23: #{temporal_downsampling.3} parent=5 // pred_region
      // Predicated region
      $region25: #{temporal_downsampling.3} parent=23 // pred_check
        %p144 = pneg %p43
      $region26: #{temporal_downsampling.3} parent=23 // pred_check_branch
        %146 = sbr.rel (%p144) target = $region28
      $region27: #{temporal_downsampling.3} parent=23 // pred_region
        %p147 = scmp.lt.s32.totalorder %s16, 1
        %s148 = scalar_select %p147, %s16, 1
        %p149 = scmp.lt.s32.totalorder %s17, 4
        %s150 = scalar_select %p149, %s17, 4
        %s151 = smul.addr %s148, 5
        %s152 = sadd.s32 %s150, %s151
        %s153 = smul.addr %s152, 8
        %s154 = scalar_lea.vmem %s0, %s153
      $region28: #{temporal_downsampling.3} parent=23 // pred_fallthru
        _
    $region24: #{temporal_downsampling.3} parent=5 // pred_fallthru
      _
    %p155 = scmp.le.s32.totalorder 1, %s9
    %p156 = scmp.lt.s32.totalorder %s9, 11
    %p157 = pnand %p155, %p156
    %p158 = pneg %p157
    // Predicated region
    $region29: #{temporal_downsampling.3} parent=5 // pred_check
      _
    $region30: #{temporal_downsampling.3} parent=5 // pred_check_branch
      %160 = sbr.rel (%p157) target = $region32
    $region31: #{temporal_downsampling.3} parent=5 // pred_region
      %s161 = ssub.s32 %s9, 1
      %p162 = scmp.lt.s32.totalorder %s18, 1
      %s163 = scalar_select %p162, %s18, 1
      %p164 = scmp.lt.s32.totalorder %s19, 4
      %s165 = scalar_select %p164, %s19, 4
      %s166 = smul.addr %s163, 5
      %s167 = sadd.s32 %s165, %s166
      %s168 = smul.addr %s167, 8
      %s169 = scalar_lea.vmem %s0, %s168
      %p170 = pneg %p49
      %p171 = pneg %p46
      %p172 = pneg %p70
      %p173 = pneg %p67
      %p174 = pneg %p91
      %p175 = pneg %p88
      %p176 = pneg %p119
      %p177 = pneg %p116
      %p178 = scmp.lt.s32.totalorder %s18, 1
      %s179 = scalar_select %p178, %s18, 1
      %p180 = scmp.lt.s32.totalorder %s19, 4
      %s181 = scalar_select %p180, %s19, 4
      %s182 = smul.addr %s179, 5
      %s183 = sadd.s32 %s181, %s182
      %s184 = smul.addr %s183, 8
      %s185 = scalar_lea.vmem %s3, %s184
      %p186 = scmp.lt.s32.totalorder %s18, 1
      %s187 = scalar_select %p186, %s18, 1
      %p188 = scmp.lt.s32.totalorder %s19, 4
      %s189 = scalar_select %p188, %s19, 4
      %s190 = smul.addr %s187, 5
      %s191 = sadd.s32 %s189, %s190
      %s192 = smul.addr %s191, 8
      %s193 = scalar_lea.vmem %s0, %s192
      %p194 = scmp.lt.s32.totalorder %s18, 1
      %s195 = scalar_select %p194, %s18, 1
      %p196 = scmp.lt.s32.totalorder %s19, 4
      %s197 = scalar_select %p196, %s19, 4
      %s198 = smul.addr %s195, 5
      %s199 = sadd.s32 %s197, %s198
      %s200 = smul.addr %s199, 8
      %s201 = scalar_lea.vmem %s3, %s200
      %v202 = vld [vmem:[%s193] sm:$0xff]
      %v203 = vld [vmem:[%s1] sm:$0xff]
      %205 = vset.pattern.permute.xlu0 0
      %206 = vperm.xlu0 %205, %v203
      %v207 = vpop.permute.xlu0 %206
      %v209 = vmul.f32 %v202, %v207
      %v210 = vld [vmem:[%s2] sm:$0xff]
      %212 = vset.pattern.permute.xlu0 0
      %213 = vperm.xlu0 %212, %v210
      %v214 = vpop.permute.xlu0 %213
      %v216 = vadd.f32 %v209, %v214
      %v217 = vmax.f32 %v216, 0.0
      %218 = vst [vmem:[%s201] sm:$0xff] %v217
      %p219 = scmp.lt.s32.totalorder %s18, 1
      %s220 = scalar_select %p219, %s18, 1
      %p221 = scmp.lt.s32.totalorder %s19, 4
      %s222 = scalar_select %p221, %s19, 4
      %s223 = smul.addr %s220, 5
      %s224 = sadd.s32 %s222, %s223
      %s225 = smul.addr %s224, 8
      %s226 = scalar_lea.vmem %s3, %s225
      // Predicated region
      $region33: #{temporal_downsampling.3} parent=31 // pred_check
        %p227 = pneg %p116
      $region34: #{temporal_downsampling.3} parent=31 // pred_check_branch
        %229 = sbr.rel (%p227) target = $region36
      $region35: #{temporal_downsampling.3} parent=31 // pred_region
        _
      $region36: #{temporal_downsampling.3} parent=31 // pred_fallthru
        _
    $region32: #{temporal_downsampling.3} parent=5 // pred_fallthru
      _
    %p230 = scmp.le.s32.totalorder 2, %s9
    // Predicated region
    $region37: #{temporal_downsampling.3} parent=5 // pred_check
      %p231 = pneg %p230
    $region38: #{temporal_downsampling.3} parent=5 // pred_check_branch
      %233 = sbr.rel (%p231) target = $region40
    $region39: #{temporal_downsampling.3} parent=5 // pred_region
      %s234 = ssub.s32 %s9, 2
      // Predicated region
      $region41: #{temporal_downsampling.3} parent=39 // pred_check
        %p235 = pneg %p122
      $region42: #{temporal_downsampling.3} parent=39 // pred_check_branch
        %237 = sbr.rel (%p235) target = $region44
      $region43: #{temporal_downsampling.3} parent=39 // pred_region
        %p238 = scmp.lt.s32.totalorder %s20, 1
        %s239 = scalar_select %p238, %s20, 1
        %p240 = scmp.lt.s32.totalorder %s21, 4
        %s241 = scalar_select %p240, %s21, 4
        %s242 = smul.addr %s239, 5
        %s243 = sadd.s32 %s241, %s242
        %s244 = smul.addr %s243, 8
        %s245 = scalar_lea.vmem %s3, %s244
      $region44: #{temporal_downsampling.3} parent=39 // pred_fallthru
        _
    $region40: #{temporal_downsampling.3} parent=5 // pred_fallthru
      _
  $region6: #{temporal_downsampling.3} parent=0 // loop_footer
    %s13 = sadd.s32 1, %s9
  $region7: #{temporal_downsampling.3} parent=0 // loop_footer_branch
    %8 = sbr.rel target = $region3
  $region8: #{temporal_downsampling.3} parent=0 // loop_exit
    _

// kernel: temporal_downsampling.2
$region0: #{temporal_downsampling.2}
  #allocation0 [shape = 'u32[]', space=smem, size = 0x4, offset = 0x4, fixed_abs, tag = 'smem constant byte address 0x4 - core index']
  #allocation1 [shape = 'u32[144,128]{1,0:T(1,128)}', space=vmem, size = 0x12000, scoped, tag = 'internal scratch']
  %s0 = inlined_call_operand.vmem [shape: f32[2,8,1152], index: 0, kind: input, shape index: {}, may-alias: {0,1,2}]
  %s1 = inlined_call_operand.vmem [shape: f32[2,8,1152], index: 1, kind: input, shape index: {}, may-alias: {0,1,2}]
  %s2 = inlined_call_operand.vmem [shape: f32[2,8,1152], index: 2, kind: input, shape index: {}, may-alias: {0,1,2}]
  %s3 = inlined_call_operand.vmem [shape: f32[8,24], index: 3, kind: input, shape index: {}]
  %s4 = inlined_call_operand.vmem [shape: f32[2,8,640], index: 4, kind: output, shape index: {0}]
  %s5 = inlined_call_operand.vmem [shape: f32[2,5,1,8,1], index: 5, kind: output, shape index: {1}]
  %s6 = inlined_call_operand.vmem [shape: f32[2,5,1,8,1], index: 6, kind: output, shape index: {2}]
  %7 = xla_tuple %s4, %s5, %s6
  %s8 = sld [smem:[#allocation0]]
  $region65: #{temporal_downsampling.2} parent=0
    _
  %s10 = ssub.s32 1, %s8
  %s11 = scalar_select 0, %s10, %s8
  loop: start=0, step=1, limit=12
  $region2: #{temporal_downsampling.2} parent=0 // loop_pre_header
    _
  $region3: #{temporal_downsampling.2} parent=0 // loop_header
    %s13 = sphi 0, %s17
    %p14 = scmp.ge.s32.totalorder %s13, 12
    %s20 = sphi 0, %s39
    %s21 = sphi 0, %s35
    %s22 = sphi 0, %s31
    %s23 = sphi 0, %s20
    %s24 = sphi 0, %s21
    %s25 = sphi 0, %s22
    %s26 = sphi 0, %s23
    %s27 = sphi 0, %s24
    %s28 = sphi 0, %s25
    %s58 = sphi 0, %s60
    %s61 = sphi 0, %s58
    %s62 = sphi 0, %s61
    %s78 = sphi 0, %s62
    %s98 = sphi 0, %s100
    %s101 = sphi 0, %s98
    %s102 = sphi 0, %s101
    %s118 = sphi 0, %s102
    %s140 = sphi 0, %s142
    %s143 = sphi 0, %s140
    %s144 = sphi 0, %s143
    %s160 = sphi 0, %s144
    %s164 = sphi 0, %s164
    %s166 = sphi 0, %s164
    %s167 = sphi 0, %s166
    %s181 = sphi 0, %s167
    %s191 = sphi 0, %s193
    %s194 = sphi 0, %s191
    %s195 = sphi 0, %s194
    %s211 = sphi 0, %s195
    %s221 = sphi 0, %s223
    %s224 = sphi 0, %s221
    %s225 = sphi 0, %s224
    %s241 = sphi 0, %s225
    %s251 = sphi 0, %s253
    %s254 = sphi 0, %s251
    %s255 = sphi 0, %s254
    %s271 = sphi 0, %s255
  $region4: #{temporal_downsampling.2} parent=0 // loop_header_branch
    %16 = sbr.rel (%p14) target = $region8
  $region5: #{temporal_downsampling.2} parent=0 // loop_body
    %s18 = ssub.s32 %s13, 1
    %s19 = ssub.s32 %s13, 2
    %s29 = sadd.s32 1, %s22
    %p30 = scmp.ge.s32.totalorder %s29, 1
    %s31 = scalar_select %p30, 0, %s29
    %s32 = sadd.s32 1, %s21
    %s33 = scalar_select %p30, %s32, %s21
    %p34 = scmp.ge.s32.totalorder %s33, 5
    %s35 = scalar_select %p34, 0, %s33
    %s36 = sadd.s32 1, %s20
    %s37 = scalar_select %p34, %s36, %s20
    %p38 = scmp.ge.s32.totalorder %s37, 2
    %s39 = scalar_select %p38, 0, %s37
    %s40 = smul.u32 %s21, 2
    %s41 = sadd.s32 %s40, 4294967295
    %p42 = scmp.gt.s32.totalorder %s41, 0
    %s43 = scalar_select %p42, %s41, 0
    %p44 = scmp.lt.s32.totalorder %s43, 8
    %s45 = scalar_select %p44, %s43, 8
    %s46 = sadd.s32 %s45, %s22
    %s47 = smul.u32 %s35, 2
    %s48 = sadd.s32 %s47, 4294967295
    %p49 = scmp.gt.s32.totalorder %s48, 0
    %s50 = scalar_select %p49, %s48, 0
    %p51 = scmp.lt.s32.totalorder %s50, 8
    %s52 = scalar_select %p51, %s50, 8
    %s53 = sadd.s32 %s52, %s31
    %s54 = ssub.s32 %s20, %s39
    %s55 = ssub.s32 %s46, %s53
    %s56 = sor.u32 %s54, %s55
    %p57 = scmp.eq.s32.totalorder %s56, 0
    %s59 = sadd.s32 %s58, 1
    %s60 = scalar_select %p57, %s58, %s59
    %p63 = pneg %p57
    %p64 = scmp.eq.s32.totalorder %s13, 9
    %p65 = por %p63, %p64
    %p66 = scmp.ne.s32.totalorder %s58, %s61
    %p67 = scmp.eq.s32.totalorder %s13, 0
    %p68 = por %p66, %p67
    %p69 = scmp.ne.s32.totalorder %s58, %s61
    %p70 = scmp.eq.s32.totalorder %s18, 9
    %p71 = por %p69, %p70
    %p72 = scmp.ne.s32.totalorder %s61, %s62
    %p73 = scmp.eq.s32.totalorder %s18, 0
    %p74 = por %p72, %p73
    %p75 = scmp.ne.s32.totalorder %s61, %s62
    %p76 = scmp.eq.s32.totalorder %s19, 9
    %p77 = por %p75, %p76
    %p79 = scmp.ne.s32.totalorder %s62, %s78
    %p80 = scmp.eq.s32.totalorder %s19, 0
    %p81 = por %p79, %p80
    %s82 = smul.u32 %s21, 2
    %p83 = scmp.gt.s32.totalorder %s82, 0
    %s84 = scalar_select %p83, %s82, 0
    %p85 = scmp.lt.s32.totalorder %s84, 8
    %s86 = scalar_select %p85, %s84, 8
    %s87 = sadd.s32 %s86, %s22
    %s88 = smul.u32 %s35, 2
    %p89 = scmp.gt.s32.totalorder %s88, 0
    %s90 = scalar_select %p89, %s88, 0
    %p91 = scmp.lt.s32.totalorder %s90, 8
    %s92 = scalar_select %p91, %s90, 8
    %s93 = sadd.s32 %s92, %s31
    %s94 = ssub.s32 %s20, %s39
    %s95 = ssub.s32 %s87, %s93
    %s96 = sor.u32 %s94, %s95
    %p97 = scmp.eq.s32.totalorder %s96, 0
    %s99 = sadd.s32 %s98, 1
    %s100 = scalar_select %p97, %s98, %s99
    %p103 = pneg %p97
    %p104 = scmp.eq.s32.totalorder %s13, 9
    %p105 = por %p103, %p104
    %p106 = scmp.ne.s32.totalorder %s98, %s101
    %p107 = scmp.eq.s32.totalorder %s13, 0
    %p108 = por %p106, %p107
    %p109 = scmp.ne.s32.totalorder %s98, %s101
    %p110 = scmp.eq.s32.totalorder %s18, 9
    %p111 = por %p109, %p110
    %p112 = scmp.ne.s32.totalorder %s101, %s102
    %p113 = scmp.eq.s32.totalorder %s18, 0
    %p114 = por %p112, %p113
    %p115 = scmp.ne.s32.totalorder %s101, %s102
    %p116 = scmp.eq.s32.totalorder %s19, 9
    %p117 = por %p115, %p116
    %p119 = scmp.ne.s32.totalorder %s102, %s118
    %p120 = scmp.eq.s32.totalorder %s19, 0
    %p121 = por %p119, %p120
    %s122 = smul.u32 %s21, 2
    %s123 = sadd.s32 %s122, 1
    %p124 = scmp.gt.s32.totalorder %s123, 0
    %s125 = scalar_select %p124, %s123, 0
    %p126 = scmp.lt.s32.totalorder %s125, 8
    %s127 = scalar_select %p126, %s125, 8
    %s128 = sadd.s32 %s127, %s22
    %s129 = smul.u32 %s35, 2
    %s130 = sadd.s32 %s129, 1
    %p131 = scmp.gt.s32.totalorder %s130, 0
    %s132 = scalar_select %p131, %s130, 0
    %p133 = scmp.lt.s32.totalorder %s132, 8
    %s134 = scalar_select %p133, %s132, 8
    %s135 = sadd.s32 %s134, %s31
    %s136 = ssub.s32 %s20, %s39
    %s137 = ssub.s32 %s128, %s135
    %s138 = sor.u32 %s136, %s137
    %p139 = scmp.eq.s32.totalorder %s138, 0
    %s141 = sadd.s32 %s140, 1
    %s142 = scalar_select %p139, %s140, %s141
    %p145 = pneg %p139
    %p146 = scmp.eq.s32.totalorder %s13, 9
    %p147 = por %p145, %p146
    %p148 = scmp.ne.s32.totalorder %s140, %s143
    %p149 = scmp.eq.s32.totalorder %s13, 0
    %p150 = por %p148, %p149
    %p151 = scmp.ne.s32.totalorder %s140, %s143
    %p152 = scmp.eq.s32.totalorder %s18, 9
    %p153 = por %p151, %p152
    %p154 = scmp.ne.s32.totalorder %s143, %s144
    %p155 = scmp.eq.s32.totalorder %s18, 0
    %p156 = por %p154, %p155
    %p157 = scmp.ne.s32.totalorder %s143, %s144
    %p158 = scmp.eq.s32.totalorder %s19, 9
    %p159 = por %p157, %p158
    %p161 = scmp.ne.s32.totalorder %s144, %s160
    %p162 = scmp.eq.s32.totalorder %s19, 0
    %p163 = por %p161, %p162
    %s165 = sadd.s32 %s164, 1
    %p168 = scmp.eq.s32.totalorder %s13, 9
    %p169 = scmp.ne.s32.totalorder %s164, %s166
    %p170 = scmp.eq.s32.totalorder %s13, 0
    %p171 = por %p169, %p170
    %p172 = scmp.ne.s32.totalorder %s164, %s166
    %p173 = scmp.eq.s32.totalorder %s18, 9
    %p174 = por %p172, %p173
    %p175 = scmp.ne.s32.totalorder %s166, %s167
    %p176 = scmp.eq.s32.totalorder %s18, 0
    %p177 = por %p175, %p176
    %p178 = scmp.ne.s32.totalorder %s166, %s167
    %p179 = scmp.eq.s32.totalorder %s19, 9
    %p180 = por %p178, %p179
    %p182 = scmp.ne.s32.totalorder %s167, %s181
    %p183 = scmp.eq.s32.totalorder %s19, 0
    %p184 = por %p182, %p183
    %s185 = sadd.s32 %s21, %s22
    %s186 = sadd.s32 %s35, %s31
    %s187 = ssub.s32 %s20, %s39
    %s188 = ssub.s32 %s185, %s186
    %s189 = sor.u32 %s187, %s188
    %p190 = scmp.eq.s32.totalorder %s189, 0
    %s192 = sadd.s32 %s191, 1
    %s193 = scalar_select %p190, %s191, %s192
    %p196 = pneg %p190
    %p197 = scmp.eq.s32.totalorder %s13, 9
    %p198 = por %p196, %p197
    %p199 = scmp.ne.s32.totalorder %s191, %s194
    %p200 = scmp.eq.s32.totalorder %s13, 0
    %p201 = por %p199, %p200
    %p202 = scmp.ne.s32.totalorder %s191, %s194
    %p203 = scmp.eq.s32.totalorder %s18, 9
    %p204 = por %p202, %p203
    %p205 = scmp.ne.s32.totalorder %s194, %s195
    %p206 = scmp.eq.s32.totalorder %s18, 0
    %p207 = por %p205, %p206
    %p208 = scmp.ne.s32.totalorder %s194, %s195
    %p209 = scmp.eq.s32.totalorder %s19, 9
    %p210 = por %p208, %p209
    %p212 = scmp.ne.s32.totalorder %s195, %s211
    %p213 = scmp.eq.s32.totalorder %s19, 0
    %p214 = por %p212, %p213
    %s215 = ssub.s32 %s20, %s39
    %s216 = ssub.s32 %s21, %s35
    %s217 = sor.u32 %s215, %s216
    %s218 = ssub.s32 %s22, %s31
    %s219 = sor.u32 %s217, %s218
    %p220 = scmp.eq.s32.totalorder %s219, 0
    %s222 = sadd.s32 %s221, 1
    %s223 = scalar_select %p220, %s221, %s222
    %p226 = pneg %p220
    %p227 = scmp.eq.s32.totalorder %s13, 9
    %p228 = por %p226, %p227
    %p229 = scmp.ne.s32.totalorder %s221, %s224
    %p230 = scmp.eq.s32.totalorder %s13, 0
    %p231 = por %p229, %p230
    %p232 = scmp.ne.s32.totalorder %s221, %s224
    %p233 = scmp.eq.s32.totalorder %s18, 9
    %p234 = por %p232, %p233
    %p235 = scmp.ne.s32.totalorder %s224, %s225
    %p236 = scmp.eq.s32.totalorder %s18, 0
    %p237 = por %p235, %p236
    %p238 = scmp.ne.s32.totalorder %s224, %s225
    %p239 = scmp.eq.s32.totalorder %s19, 9
    %p240 = por %p238, %p239
    %p242 = scmp.ne.s32.totalorder %s225, %s241
    %p243 = scmp.eq.s32.totalorder %s19, 0
    %p244 = por %p242, %p243
    %s245 = ssub.s32 %s20, %s39
    %s246 = ssub.s32 %s21, %s35
    %s247 = sor.u32 %s245, %s246
    %s248 = ssub.s32 %s22, %s31
    %s249 = sor.u32 %s247, %s248
    %p250 = scmp.eq.s32.totalorder %s249, 0
    %s252 = sadd.s32 %s251, 1
    %s253 = scalar_select %p250, %s251, %s252
    %p256 = pneg %p250
    %p257 = scmp.eq.s32.totalorder %s13, 9
    %p258 = por %p256, %p257
    %p259 = scmp.ne.s32.totalorder %s251, %s254
    %p260 = scmp.eq.s32.totalorder %s13, 0
    %p261 = por %p259, %p260
    %p262 = scmp.ne.s32.totalorder %s251, %s254
    %p263 = scmp.eq.s32.totalorder %s18, 9
    %p264 = por %p262, %p263
    %p265 = scmp.ne.s32.totalorder %s254, %s255
    %p266 = scmp.eq.s32.totalorder %s18, 0
    %p267 = por %p265, %p266
    %p268 = scmp.ne.s32.totalorder %s254, %s255
    %p269 = scmp.eq.s32.totalorder %s19, 9
    %p270 = por %p268, %p269
    %p272 = scmp.ne.s32.totalorder %s255, %s271
    %p273 = scmp.eq.s32.totalorder %s19, 0
    %p274 = por %p272, %p273
    %p275 = scmp.le.s32.totalorder 1, %s13
    %p276 = scmp.lt.s32.totalorder %s13, 11
    %p277 = pnand %p275, %p276
    %p278 = pneg %p277
    // Predicated region
    $region9: #{temporal_downsampling.2} parent=5 // pred_check
      _
    $region10: #{temporal_downsampling.2} parent=5 // pred_check_branch
      %280 = sbr.rel (%p277) target = $region12
    $region11: #{temporal_downsampling.2} parent=5 // pred_region
      %s281 = ssub.s32 %s13, 1
      // Predicated region
      $region13: #{temporal_downsampling.2} parent=11 // pred_check
        %p282 = pneg %p177
      $region14: #{temporal_downsampling.2} parent=11 // pred_check_branch
        %284 = sbr.rel (%p282) target = $region16
      $region15: #{temporal_downsampling.2} parent=11 // pred_region
        _
      $region16: #{temporal_downsampling.2} parent=11 // pred_fallthru
        _
    $region12: #{temporal_downsampling.2} parent=5 // pred_fallthru
      _
    %p285 = scmp.lt.s32.totalorder %s13, 10
    // Predicated region
    $region17: #{temporal_downsampling.2} parent=5 // pred_check
      %p286 = pneg %p285
    $region18: #{temporal_downsampling.2} parent=5 // pred_check_branch
      %288 = sbr.rel (%p286) target = $region20
    $region19: #{temporal_downsampling.2} parent=5 // pred_region
      // Predicated region
      $region21: #{temporal_downsampling.2} parent=19 // pred_check
        %p289 = pneg %p68
      $region22: #{temporal_downsampling.2} parent=19 // pred_check_branch
        %291 = sbr.rel (%p289) target = $region24
      $region23: #{temporal_downsampling.2} parent=19 // pred_region
        %s292 = smul.u32 %s21, 2
        %s293 = sadd.s32 %s292, 4294967295
        %p294 = scmp.gt.s32.totalorder %s293, 0
        %s295 = scalar_select %p294, %s293, 0
        %p296 = scmp.lt.s32.totalorder %s295, 8
        %s297 = scalar_select %p296, %s295, 8
        %s298 = sadd.s32 %s297, %s22
        %p299 = scmp.lt.s32.totalorder %s20, 1
        %s300 = scalar_select %p299, %s20, 1
        %p301 = scmp.lt.s32.totalorder %s298, 8
        %s302 = scalar_select %p301, %s298, 8
        %s303 = smul.addr %s300, 9
        %s304 = sadd.s32 %s302, %s303
        %s305 = smul.addr %s304, 8
        %s306 = scalar_lea.vmem %s0, %s305
        %s307 = smul.u32 %s21, 2
        %s308 = sadd.s32 %s307, 4294967295
        %p309 = scmp.gt.s32.totalorder %s308, 0
        %s310 = scalar_select %p309, %s308, 0
        %p311 = scmp.lt.s32.totalorder %s310, 8
        %s312 = scalar_select %p311, %s310, 8
        %s313 = sadd.s32 %s312, %s22
      $region24: #{temporal_downsampling.2} parent=19 // pred_fallthru
        _
      // Predicated region
      $region25: #{temporal_downsampling.2} parent=19 // pred_check
        %p314 = pneg %p108
      $region26: #{temporal_downsampling.2} parent=19 // pred_check_branch
        %316 = sbr.rel (%p314) target = $region28
      $region27: #{temporal_downsampling.2} parent=19 // pred_region
        %s317 = smul.u32 %s21, 2
        %p318 = scmp.gt.s32.totalorder %s317, 0
        %s319 = scalar_select %p318, %s317, 0
        %p320 = scmp.lt.s32.totalorder %s319, 8
        %s321 = scalar_select %p320, %s319, 8
        %s322 = sadd.s32 %s321, %s22
        %p323 = scmp.lt.s32.totalorder %s20, 1
        %s324 = scalar_select %p323, %s20, 1
        %p325 = scmp.lt.s32.totalorder %s322, 8
        %s326 = scalar_select %p325, %s322, 8
        %s327 = smul.addr %s324, 9
        %s328 = sadd.s32 %s326, %s327
        %s329 = smul.addr %s328, 8
        %s330 = scalar_lea.vmem %s1, %s329
        %s331 = smul.u32 %s21, 2
        %p332 = scmp.gt.s32.totalorder %s331, 0
        %s333 = scalar_select %p332, %s331, 0
        %p334 = scmp.lt.s32.totalorder %s333, 8
        %s335 = scalar_select %p334, %s333, 8
        %s336 = sadd.s32 %s335, %s22
      $region28: #{temporal_downsampling.2} parent=19 // pred_fallthru
        _
      // Predicated region
      $region29: #{temporal_downsampling.2} parent=19 // pred_check
        %p337 = pneg %p150
      $region30: #{temporal_downsampling.2} parent=19 // pred_check_branch
        %339 = sbr.rel (%p337) target = $region32
      $region31: #{temporal_downsampling.2} parent=19 // pred_region
        %s340 = smul.u32 %s21, 2
        %s341 = sadd.s32 %s340, 1
        %p342 = scmp.gt.s32.totalorder %s341, 0
        %s343 = scalar_select %p342, %s341, 0
        %p344 = scmp.lt.s32.totalorder %s343, 8
        %s345 = scalar_select %p344, %s343, 8
        %s346 = sadd.s32 %s345, %s22
        %p347 = scmp.lt.s32.totalorder %s20, 1
        %s348 = scalar_select %p347, %s20, 1
        %p349 = scmp.lt.s32.totalorder %s346, 8
        %s350 = scalar_select %p349, %s346, 8
        %s351 = smul.addr %s348, 9
        %s352 = sadd.s32 %s350, %s351
        %s353 = smul.addr %s352, 8
        %s354 = scalar_lea.vmem %s2, %s353
        %s355 = smul.u32 %s21, 2
        %s356 = sadd.s32 %s355, 1
        %p357 = scmp.gt.s32.totalorder %s356, 0
        %s358 = scalar_select %p357, %s356, 0
        %p359 = scmp.lt.s32.totalorder %s358, 8
        %s360 = scalar_select %p359, %s358, 8
        %s361 = sadd.s32 %s360, %s22
      $region32: #{temporal_downsampling.2} parent=19 // pred_fallthru
        _
    $region20: #{temporal_downsampling.2} parent=5 // pred_fallthru
      _
    %p362 = scmp.le.s32.totalorder 1, %s13
    %p363 = scmp.lt.s32.totalorder %s13, 11
    %p364 = pnand %p362, %p363
    %p365 = pneg %p364
    // Predicated region
    $region33: #{temporal_downsampling.2} parent=5 // pred_check
      _
    $region34: #{temporal_downsampling.2} parent=5 // pred_check_branch
      %367 = sbr.rel (%p364) target = $region36
    $region35: #{temporal_downsampling.2} parent=5 // pred_region
      %s368 = ssub.s32 %s13, 1
      %s369 = smul.u32 %s24, 2
      %s370 = sadd.s32 %s369, 4294967295
      %p371 = scmp.gt.s32.totalorder %s370, 0
      %s372 = scalar_select %p371, %s370, 0
      %p373 = scmp.lt.s32.totalorder %s372, 8
      %s374 = scalar_select %p373, %s372, 8
      %s375 = sadd.s32 %s374, %s25
      %p376 = scmp.lt.s32.totalorder %s23, 1
      %s377 = scalar_select %p376, %s23, 1
      %p378 = scmp.lt.s32.totalorder %s375, 8
      %s379 = scalar_select %p378, %s375, 8
      %s380 = smul.addr %s377, 9
      %s381 = sadd.s32 %s379, %s380
      %s382 = smul.addr %s381, 8
      %s383 = scalar_lea.vmem %s0, %s382
      %p384 = pneg %p74
      %p385 = pneg %p71
      %s386 = smul.u32 %s24, 2
      %p387 = scmp.gt.s32.totalorder %s386, 0
      %s388 = scalar_select %p387, %s386, 0
      %p389 = scmp.lt.s32.totalorder %s388, 8
      %s390 = scalar_select %p389, %s388, 8
      %s391 = sadd.s32 %s390, %s25
      %p392 = scmp.lt.s32.totalorder %s23, 1
      %s393 = scalar_select %p392, %s23, 1
      %p394 = scmp.lt.s32.totalorder %s391, 8
      %s395 = scalar_select %p394, %s391, 8
      %s396 = smul.addr %s393, 9
      %s397 = sadd.s32 %s395, %s396
      %s398 = smul.addr %s397, 8
      %s399 = scalar_lea.vmem %s1, %s398
      %p400 = pneg %p114
      %p401 = pneg %p111
      %s402 = smul.u32 %s24, 2
      %s403 = sadd.s32 %s402, 1
      %p404 = scmp.gt.s32.totalorder %s403, 0
      %s405 = scalar_select %p404, %s403, 0
      %p406 = scmp.lt.s32.totalorder %s405, 8
      %s407 = scalar_select %p406, %s405, 8
      %s408 = sadd.s32 %s407, %s25
      %p409 = scmp.lt.s32.totalorder %s23, 1
      %s410 = scalar_select %p409, %s23, 1
      %p411 = scmp.lt.s32.totalorder %s408, 8
      %s412 = scalar_select %p411, %s408, 8
      %s413 = smul.addr %s410, 9
      %s414 = sadd.s32 %s412, %s413
      %s415 = smul.addr %s414, 8
      %s416 = scalar_lea.vmem %s2, %s415
      %p417 = pneg %p156
      %p418 = pneg %p153
      %p419 = pneg %p177
      %p420 = pneg %p174
      %p421 = pneg %p207
      %p422 = pneg %p204
      %s423 = sadd.s32 %s24, %s25
      %p424 = scmp.lt.s32.totalorder %s23, 1
      %s425 = scalar_select %p424, %s23, 1
      %p426 = scmp.lt.s32.totalorder %s423, 4
      %s427 = scalar_select %p426, %s423, 4
      %s428 = smul.addr %s425, 5
      %s429 = sadd.s32 %s427, %s428
      %s430 = smul.addr %s429, 8
      %s431 = scalar_lea.vmem %s4, %s430
      %p432 = pneg %p237
      %p433 = pneg %p234
      %p434 = scmp.lt.s32.totalorder %s23, 1
      %s435 = scalar_select %p434, %s23, 1
      %p436 = scmp.lt.s32.totalorder %s24, 4
      %s437 = scalar_select %p436, %s24, 4
      %p438 = scmp.lt.s32.totalorder %s25, 0
      %s439 = scalar_select %p438, %s25, 0
      %s440 = sadd.s32 %s439, %s437
      %s441 = smul.addr %s435, 5
      %s442 = sadd.s32 %s440, %s441
      %s443 = smul.addr %s442, 8
      %s444 = scalar_lea.vmem %s5, %s443
      %p445 = pneg %p267
      %p446 = pneg %p264
      %p447 = scmp.lt.s32.totalorder %s23, 1
      %s448 = scalar_select %p447, %s23, 1
      %p449 = scmp.lt.s32.totalorder %s24, 4
      %s450 = scalar_select %p449, %s24, 4
      %p451 = scmp.lt.s32.totalorder %s25, 0
      %s452 = scalar_select %p451, %s25, 0
      %s453 = sadd.s32 %s452, %s450
      %s454 = smul.addr %s448, 5
      %s455 = sadd.s32 %s453, %s454
      %s456 = smul.addr %s455, 8
      %s457 = scalar_lea.vmem %s6, %s456
      %s458 = smul.u32 %s24, 2
      %s459 = sadd.s32 %s458, 4294967295
      %p460 = scmp.gt.s32.totalorder %s459, 0
      %s461 = scalar_select %p460, %s459, 0
      %p462 = scmp.lt.s32.totalorder %s461, 8
      %s463 = scalar_select %p462, %s461, 8
      %s464 = sadd.s32 %s463, %s25
      %p465 = scmp.lt.s32.totalorder %s23, 1
      %s466 = scalar_select %p465, %s23, 1
      %p467 = scmp.lt.s32.totalorder %s464, 8
      %s468 = scalar_select %p467, %s464, 8
      %s469 = smul.addr %s466, 9
      %s470 = sadd.s32 %s468, %s469
      %s471 = smul.addr %s470, 8
      %s472 = scalar_lea.vmem %s0, %s471
      %s473 = smul.u32 %s24, 2
      %s474 = sadd.s32 %s473, 4294967295
      %p475 = scmp.gt.s32.totalorder %s474, 0
      %s476 = scalar_select %p475, %s474, 0
      %p477 = scmp.lt.s32.totalorder %s476, 8
      %s478 = scalar_select %p477, %s476, 8
      %s479 = sadd.s32 %s478, %s25
      %s480 = smul.u32 %s24, 2
      %p481 = scmp.gt.s32.totalorder %s480, 0
      %s482 = scalar_select %p481, %s480, 0
      %p483 = scmp.lt.s32.totalorder %s482, 8
      %s484 = scalar_select %p483, %s482, 8
      %s485 = sadd.s32 %s484, %s25
      %p486 = scmp.lt.s32.totalorder %s23, 1
      %s487 = scalar_select %p486, %s23, 1
      %p488 = scmp.lt.s32.totalorder %s485, 8
      %s489 = scalar_select %p488, %s485, 8
      %s490 = smul.addr %s487, 9
      %s491 = sadd.s32 %s489, %s490
      %s492 = smul.addr %s491, 8
      %s493 = scalar_lea.vmem %s1, %s492
      %s494 = smul.u32 %s24, 2
      %p495 = scmp.gt.s32.totalorder %s494, 0
      %s496 = scalar_select %p495, %s494, 0
      %p497 = scmp.lt.s32.totalorder %s496, 8
      %s498 = scalar_select %p497, %s496, 8
      %s499 = sadd.s32 %s498, %s25
      %s500 = smul.u32 %s24, 2
      %s501 = sadd.s32 %s500, 1
      %p502 = scmp.gt.s32.totalorder %s501, 0
      %s503 = scalar_select %p502, %s501, 0
      %p504 = scmp.lt.s32.totalorder %s503, 8
      %s505 = scalar_select %p504, %s503, 8
      %s506 = sadd.s32 %s505, %s25
      %p507 = scmp.lt.s32.totalorder %s23, 1
      %s508 = scalar_select %p507, %s23, 1
      %p509 = scmp.lt.s32.totalorder %s506, 8
      %s510 = scalar_select %p509, %s506, 8
      %s511 = smul.addr %s508, 9
      %s512 = sadd.s32 %s510, %s511
      %s513 = smul.addr %s512, 8
      %s514 = scalar_lea.vmem %s2, %s513
      %s515 = smul.u32 %s24, 2
      %s516 = sadd.s32 %s515, 1
      %p517 = scmp.gt.s32.totalorder %s516, 0
      %s518 = scalar_select %p517, %s516, 0
      %p519 = scmp.lt.s32.totalorder %s518, 8
      %s520 = scalar_select %p519, %s518, 8
      %s521 = sadd.s32 %s520, %s25
      %s522 = sadd.s32 %s24, %s25
      %p523 = scmp.lt.s32.totalorder %s23, 1
      %s524 = scalar_select %p523, %s23, 1
      %p525 = scmp.lt.s32.totalorder %s522, 4
      %s526 = scalar_select %p525, %s522, 4
      %s527 = smul.addr %s524, 5
      %s528 = sadd.s32 %s526, %s527
      %s529 = smul.addr %s528, 8
      %s530 = scalar_lea.vmem %s4, %s529
      %s531 = sadd.s32 %s24, %s25
      %p532 = scmp.lt.s32.totalorder %s23, 1
      %s533 = scalar_select %p532, %s23, 1
      %p534 = scmp.lt.s32.totalorder %s24, 4
      %s535 = scalar_select %p534, %s24, 4
      %p536 = scmp.lt.s32.totalorder %s25, 0
      %s537 = scalar_select %p536, %s25, 0
      %s538 = sadd.s32 %s537, %s535
      %s539 = smul.addr %s533, 5
      %s540 = sadd.s32 %s538, %s539
      %s541 = smul.addr %s540, 8
      %s542 = scalar_lea.vmem %s5, %s541
      %p543 = scmp.lt.s32.totalorder %s23, 1
      %s544 = scalar_select %p543, %s23, 1
      %p545 = scmp.lt.s32.totalorder %s24, 4
      %s546 = scalar_select %p545, %s24, 4
      %p547 = scmp.lt.s32.totalorder %s25, 0
      %s548 = scalar_select %p547, %s25, 0
      %s549 = sadd.s32 %s548, %s546
      %s550 = smul.addr %s544, 5
      %s551 = sadd.s32 %s549, %s550
      %s552 = smul.addr %s551, 8
      %s553 = scalar_lea.vmem %s6, %s552
      %s554 = smul.u32 %s24, 2
      %s555 = ssub.s32 %s554, 1
      %v556 = vld [vmem:[%s472] sm:$0xff]
      %p557 = scmp.ge.s32.totalorder %s555, 0
      %p558 = scmp.lt.s32.totalorder %s555, 9
      %p559 = pnand %p557, %p558
      %p560 = pneg %p559
      %s561 = scalar_select %p560, 1, 0
      %s562 = scvt.s32.f32 %s561
      %v563 = vstv %s562
      %v564 = vmul.f32 %v556, %v563
      %v565 = vld [vmem:[%s493] sm:$0xff]
      %v566 = vld [vmem:[%s514] sm:$0xff]
      %s567 = sadd.s32 %s554, 1
      %p568 = scmp.ge.s32.totalorder %s567, 0
      %p569 = scmp.lt.s32.totalorder %s567, 9
      %p570 = pnand %p568, %p569
      %p571 = pneg %p570
      %s572 = scalar_select %p571, 1, 0
      %s573 = scvt.s32.f32 %s572
      %v574 = vstv %s573
      %v575 = vmul.f32 %v566, %v574
      %v576 = vld [vmem:[%s3] sm:$0xff]
      %vm577 = vcmask 195584
      %v579 = vsel %vm577, %v576, 0
      %581 = vmatprep.subr.mxu0 0.0
      %582 = vmatpush1.msra.mxu0 0.0
      %583 = vmatprep.subr.mxu0 0.0
      %584 = vmatpush1.msra.mxu0 0.0
      %585 = vmatprep.subr.mxu0 0.0
      %586 = vmatpush1.msra.mxu0 0.0
      %587 = vmatprep.subr.mxu0 0.0
      %588 = vmatpush1.msra.mxu0 0.0
      %589 = vmatprep.subr.mxu0 0.0
      %590 = vmatpush1.msra.mxu0 0.0
      %591 = vmatprep.subr.mxu0 0.0
      %592 = vmatpush1.msra.mxu0 0.0
      %593 = vmatprep.subr.mxu0 0.0
      %594 = vmatpush1.msra.mxu0 0.0
      %595 = vmatprep.subr.mxu0 0.0
      %596 = vmatpush1.msra.mxu0 0.0
      %597 = vmatprep.subr.mxu0 0.0
      %598 = vmatpush1.msra.mxu0 0.0
      %599 = vmatprep.subr.mxu0 0.0
      %600 = vmatpush1.msra.mxu0 0.0
      %601 = vmatprep.subr.mxu0 0.0
      %602 = vmatpush1.msra.mxu0 0.0
      %603 = vmatprep.subr.mxu0 0.0
      %604 = vmatpush1.msra.mxu0 0.0
      %605 = vmatprep.subr.mxu0 0.0
      %606 = vmatpush1.msra.mxu0 0.0
      %607 = vmatprep.subr.mxu0 0.0
      %608 = vmatpush1.msra.mxu0 %v575
      %609 = vmatprep.subr.mxu0 0.0
      %610 = vmatpush1.msra.mxu0 %v565
      %611 = vmatprep.subr.mxu0 0.0
      %612 = vmatpush1.msra.mxu0 %v564
      %613 = vmatprep.subr.mxu0 0.0
      %614 = vmatpush2.msra.mxu0 0.0
      %615 = vmatprep.subr.mxu0 0.0
      %616 = vmatpush2.msra.mxu0 0.0
      %617 = vmatprep.subr.mxu0 0.0
      %618 = vmatpush2.msra.mxu0 0.0
      %619 = vmatprep.subr.mxu0 0.0
      %620 = vmatpush2.msra.mxu0 0.0
      %621 = vmatprep.subr.mxu0 0.0
      %622 = vmatpush2.msra.mxu0 0.0
      %623 = vmatprep.subr.mxu0 0.0
      %624 = vmatpush2.msra.mxu0 0.0
      %625 = vmatprep.subr.mxu0 0.0
      %626 = vmatpush2.msra.mxu0 0.0
      %627 = vmatprep.subr.mxu0 0.0
      %628 = vmatpush2.msra.mxu0 0.0
      %629 = vmatprep.subr.mxu0 0.0
      %630 = vmatpush2.msra.mxu0 0.0
      %631 = vmatprep.subr.mxu0 0.0
      %632 = vmatpush2.msra.mxu0 0.0
      %633 = vmatprep.subr.mxu0 0.0
      %634 = vmatpush2.msra.mxu0 0.0
      %635 = vmatprep.subr.mxu0 0.0
      %636 = vmatpush2.msra.mxu0 0.0
      %637 = vmatprep.subr.mxu0 0.0
      %638 = vmatpush2.msra.mxu0 0.0
      %639 = vmatprep.subr.mxu0 0.0
      %640 = vmatpush2.msra.mxu0 0.0
      %641 = vmatprep.subr.mxu0 0.0
      %642 = vmatpush2.msra.mxu0 0.0
      %643 = vmatprep.subr.mxu0 0.0
      %644 = vmatpush2.msra.mxu0 0.0
      %645 = vmatprep.mubr.f32.mxu0 0.0
      %646 = vmatmul.mubr.f32.gmra.mxu0 %v579
      %v647 = vpop.f32.mrf.mxu0
      %v648 = vadd.f32 0.0, %v647
      %v649 = vpop.f32.mrf.mxu0
      %650 = vdwg.mxu0
      %651 = vst [vmem:[%s530] sm:$0xff] %v648
      %652 = vadd.xlane.f32.xlu0 %v648
      %v653 = vpop.xlane.xlu0 %652
      %vm654 = vcmask 7168
      %655 = vst.msk [vmem:[%s542] sm:$0xff] %vm654, %v653
      %v656 = vmul.f32 %v648, %v648
      %657 = vadd.xlane.f32.xlu0 %v656
      %v658 = vpop.xlane.xlu0 %657
      %659 = vst.msk [vmem:[%s553] sm:$0xff] %vm654, %v658
      %s660 = sadd.s32 %s24, %s25
      %p661 = scmp.lt.s32.totalorder %s23, 1
      %s662 = scalar_select %p661, %s23, 1
      %p663 = scmp.lt.s32.totalorder %s660, 4
      %s664 = scalar_select %p663, %s660, 4
      %s665 = smul.addr %s662, 5
      %s666 = sadd.s32 %s664, %s665
      %s667 = smul.addr %s666, 8
      %s668 = scalar_lea.vmem %s4, %s667
      %p669 = scmp.lt.s32.totalorder %s23, 1
      %s670 = scalar_select %p669, %s23, 1
      %p671 = scmp.lt.s32.totalorder %s24, 4
      %s672 = scalar_select %p671, %s24, 4
      %p673 = scmp.lt.s32.totalorder %s25, 0
      %s674 = scalar_select %p673, %s25, 0
      %s675 = sadd.s32 %s674, %s672
      %s676 = smul.addr %s670, 5
      %s677 = sadd.s32 %s675, %s676
      %s678 = smul.addr %s677, 8
      %s679 = scalar_lea.vmem %s5, %s678
      %p680 = scmp.lt.s32.totalorder %s23, 1
      %s681 = scalar_select %p680, %s23, 1
      %p682 = scmp.lt.s32.totalorder %s24, 4
      %s683 = scalar_select %p682, %s24, 4
      %p684 = scmp.lt.s32.totalorder %s25, 0
      %s685 = scalar_select %p684, %s25, 0
      %s686 = sadd.s32 %s685, %s683
      %s687 = smul.addr %s681, 5
      %s688 = sadd.s32 %s686, %s687
      %s689 = smul.addr %s688, 8
      %s690 = scalar_lea.vmem %s6, %s689
      // Predicated region
      $region37: #{temporal_downsampling.2} parent=35 // pred_check
        %p691 = pneg %p204
      $region38: #{temporal_downsampling.2} parent=35 // pred_check_branch
        %693 = sbr.rel (%p691) target = $region40
      $region39: #{temporal_downsampling.2} parent=35 // pred_region
        %s694 = sadd.s32 %s24, %s25
      $region40: #{temporal_downsampling.2} parent=35 // pred_fallthru
        _
      // Predicated region
      $region41: #{temporal_downsampling.2} parent=35 // pred_check
        %p695 = pneg %p234
      $region42: #{temporal_downsampling.2} parent=35 // pred_check_branch
        %697 = sbr.rel (%p695) target = $region44
      $region43: #{temporal_downsampling.2} parent=35 // pred_region
        _
      $region44: #{temporal_downsampling.2} parent=35 // pred_fallthru
        _
      // Predicated region
      $region45: #{temporal_downsampling.2} parent=35 // pred_check
        %p698 = pneg %p264
      $region46: #{temporal_downsampling.2} parent=35 // pred_check_branch
        %700 = sbr.rel (%p698) target = $region48
      $region47: #{temporal_downsampling.2} parent=35 // pred_region
        _
      $region48: #{temporal_downsampling.2} parent=35 // pred_fallthru
        _
    $region36: #{temporal_downsampling.2} parent=5 // pred_fallthru
      _
    %p701 = scmp.le.s32.totalorder 2, %s13
    // Predicated region
    $region49: #{temporal_downsampling.2} parent=5 // pred_check
      %p702 = pneg %p701
    $region50: #{temporal_downsampling.2} parent=5 // pred_check_branch
      %704 = sbr.rel (%p702) target = $region52
    $region51: #{temporal_downsampling.2} parent=5 // pred_region
      %s705 = ssub.s32 %s13, 2
      // Predicated region
      $region53: #{temporal_downsampling.2} parent=51 // pred_check
        %p706 = pneg %p210
      $region54: #{temporal_downsampling.2} parent=51 // pred_check_branch
        %708 = sbr.rel (%p706) target = $region56
      $region55: #{temporal_downsampling.2} parent=51 // pred_region
        %s709 = sadd.s32 %s27, %s28
        %p710 = scmp.lt.s32.totalorder %s26, 1
        %s711 = scalar_select %p710, %s26, 1
        %p712 = scmp.lt.s32.totalorder %s709, 4
        %s713 = scalar_select %p712, %s709, 4
        %s714 = smul.addr %s711, 5
        %s715 = sadd.s32 %s713, %s714
        %s716 = smul.addr %s715, 8
        %s717 = scalar_lea.vmem %s4, %s716
      $region56: #{temporal_downsampling.2} parent=51 // pred_fallthru
        _
      // Predicated region
      $region57: #{temporal_downsampling.2} parent=51 // pred_check
        %p718 = pneg %p240
      $region58: #{temporal_downsampling.2} parent=51 // pred_check_branch
        %720 = sbr.rel (%p718) target = $region60
      $region59: #{temporal_downsampling.2} parent=51 // pred_region
        %p721 = scmp.lt.s32.totalorder %s26, 1
        %s722 = scalar_select %p721, %s26, 1
        %p723 = scmp.lt.s32.totalorder %s27, 4
        %s724 = scalar_select %p723, %s27, 4
        %p725 = scmp.lt.s32.totalorder %s28, 0
        %s726 = scalar_select %p725, %s28, 0
        %s727 = sadd.s32 %s726, %s724
        %s728 = smul.addr %s722, 5
        %s729 = sadd.s32 %s727, %s728
        %s730 = smul.addr %s729, 8
        %s731 = scalar_lea.vmem %s5, %s730
      $region60: #{temporal_downsampling.2} parent=51 // pred_fallthru
        _
      // Predicated region
      $region61: #{temporal_downsampling.2} parent=51 // pred_check
        %p732 = pneg %p270
      $region62: #{temporal_downsampling.2} parent=51 // pred_check_branch
        %734 = sbr.rel (%p732) target = $region64
      $region63: #{temporal_downsampling.2} parent=51 // pred_region
        %p735 = scmp.lt.s32.totalorder %s26, 1
        %s736 = scalar_select %p735, %s26, 1
        %p737 = scmp.lt.s32.totalorder %s27, 4
        %s738 = scalar_select %p737, %s27, 4
        %p739 = scmp.lt.s32.totalorder %s28, 0
        %s740 = scalar_select %p739, %s28, 0
        %s741 = sadd.s32 %s740, %s738
        %s742 = smul.addr %s736, 5
        %s743 = sadd.s32 %s741, %s742
        %s744 = smul.addr %s743, 8
        %s745 = scalar_lea.vmem %s6, %s744
      $region64: #{temporal_downsampling.2} parent=51 // pred_fallthru
        _
    $region52: #{temporal_downsampling.2} parent=5 // pred_fallthru
      _
  $region6: #{temporal_downsampling.2} parent=0 // loop_footer
    %s17 = sadd.s32 1, %s13
  $region7: #{temporal_downsampling.2} parent=0 // loop_footer_branch
    %12 = sbr.rel target = $region3
  $region8: #{temporal_downsampling.2} parent=0 // loop_exit
    _

</llo_original>
